<compile_context>
chip_gen: v6e
topology: v6e:2x2x1
jax: 0.10.0
libtpu: 0.0.40
codegen_flags: <defaults>
</compile_context>

<pallas_src>
import functools

import jax
import jax.numpy as jnp
from jax.experimental import pallas as pl
from jax.experimental.pallas import tpu as pltpu


def _linear_sigmoid_kernel(wt_ref, xt_ref, b_ref, ot_ref):
    # z[Out, TB] = wT[Out, In] @ xT[In, TB]  (MXU, f32 accumulate)
    z = jnp.dot(wt_ref[...], xt_ref[...], preferred_element_type=jnp.float32)
    z = z + b_ref[...]                       # (Out, TB) + (Out, 1) lane broadcast
    ot_ref[...] = jax.nn.sigmoid(z).astype(ot_ref.dtype)


@functools.partial(jax.jit, static_argnames=("tile_b",))
def simple_robot_network(x, w, b, *, tile_b=1024):
    """x: [B, In], w: [In, Out], b: [Out] -> sigmoid(x @ w + b), shape [B, Out]."""
    B, In = x.shape
    Out = w.shape[1]

    # Lane-dense layout: batch on the (fast) 128-lane axis.
    x_t = x.T                     # [In, B]
    w_t = w.T                     # [Out, In]
    b2 = b.reshape(Out, 1)        # [Out, 1]

    if B <= tile_b:
        # Single block; block shapes equal the full array dims, so no
        # (8, 128) padding requirement applies.
        tb = B
        b_pad = B
    else:
        tb = tile_b                                # multiple of 128
        b_pad = pl.cdiv(B, tb) * tb
        if b_pad != B:
            x_t = jnp.pad(x_t, ((0, 0), (0, b_pad - B)))

    grid = (b_pad // tb,)

    out_t = pl.pallas_call(
        _linear_sigmoid_kernel,
        out_shape=jax.ShapeDtypeStruct((Out, b_pad), x.dtype),
        grid_spec=pl.GridSpec(
            grid=grid,
            in_specs=[
                pl.BlockSpec((Out, In), lambda i: (0, 0)),   # weights: VMEM-resident
                pl.BlockSpec((In, tb), lambda i: (0, i)),    # batch tile of activations
                pl.BlockSpec((Out, 1), lambda i: (0, 0)),    # bias: VMEM-resident
            ],
            out_specs=pl.BlockSpec((Out, tb), lambda i: (0, i)),
        ),
        compiler_params=pltpu.CompilerParams(
            # Each batch tile is independent (no accumulator) -> shard across
            # TensorCores on v7x.
            dimension_semantics=("parallel",),
            # Explicit VMEM budget with ample headroom on every chip
            # (v7x scoped default would also be fine at this tile size).
            vmem_limit_bytes=32 * 1024 * 1024,
        ),
    )(w_t, x_t, b2)

    return out_t[:, :B].T          # back to [B, Out]


if __name__ == "__main__":
    input_size = 9
    output_size = 2
    batch = 8

    key = jax.random.PRNGKey(0)
    kx, kw, kb, kx2 = jax.random.split(key, 4)

    # Deterministic parameter init (mimics PyTorch's U(-1/sqrt(in), 1/sqrt(in))).
    bound = 1.0 / jnp.sqrt(jnp.float32(input_size))
    w = jax.random.uniform(kw, (input_size, output_size), jnp.float32, -bound, bound)
    b = jax.random.uniform(kb, (output_size,), jnp.float32, -bound, bound)

    # Small demo batch (single-block path).
    x = jax.random.normal(kx, (batch, input_size), jnp.float32)
    out = simple_robot_network(x, w, b)
    jax.block_until_ready(out)
    ref = jax.nn.sigmoid(x @ w + b[None, :])
    assert out.shape == (batch, output_size)
    assert jnp.allclose(out, ref, atol=1e-5, rtol=1e-5)

    # Exercise the tiled path: >1 grid step plus ragged-batch padding.
    batch_big = 2050
    x_big = jax.random.normal(kx2, (batch_big, input_size), jnp.float32)
    out_big = simple_robot_network(x_big, w, b)
    jax.block_until_ready(out_big)
    ref_big = jax.nn.sigmoid(x_big @ w + b[None, :])
    assert out_big.shape == (batch_big, output_size)
    assert jnp.allclose(out_big, ref_big, atol=1e-5, rtol=1e-5)

    print("KERNEL_OK")
</pallas_src>

<mosaic_0001>
module attributes {stable_mosaic.version = 11 : i64} {
  func.func @_linear_sigmoid_kernel(%arg0: i32, %arg1: memref<2x9xf32, #tpu.memory_space<vmem>>, %arg2: memref<9x8xf32, #tpu.memory_space<vmem>>, %arg3: memref<2x1xf32, #tpu.memory_space<vmem>>, %arg4: memref<2x8xf32, #tpu.memory_space<vmem>>) attributes {dimension_semantics = [#tpu.dimension_semantics<parallel>], iteration_bounds = array<i64: 1>, scalar_prefetch = 0 : i64, scratch_operands = 0 : i64, tpu.core_type = #tpu.core_type<tc>, window_params = [{pipeline_mode = #tpu.pipeline_mode<synchronous>, transform_indices = @transform_0, window_bounds = array<i64: 2, 9>}, {transform_indices = @transform_1, window_bounds = array<i64: 9, 8>}, {pipeline_mode = #tpu.pipeline_mode<synchronous>, transform_indices = @transform_2, window_bounds = array<i64: 2, 1>}, {transform_indices = @transform_3, window_bounds = array<i64: 2, 8>}]} {
    %c0 = arith.constant 0 : index
    %c0_0 = arith.constant 0 : index
    %0 = vector.load %arg1[%c0, %c0_0] : memref<2x9xf32, #tpu.memory_space<vmem>>, vector<2x9xf32>
    %c0_1 = arith.constant 0 : index
    %c0_2 = arith.constant 0 : index
    %1 = vector.load %arg2[%c0_1, %c0_2] : memref<9x8xf32, #tpu.memory_space<vmem>>, vector<9x8xf32>
    %cst = arith.constant dense<0.000000e+00> : vector<2x8xf32>
    %2 = tpu.matmul %0, %1, %cst {dimension_numbers = #tpu.dot_dimension_numbers<[1], [0], [0], [1], [0, 0, 1, 1], [], []>} : vector<2x9xf32>, vector<9x8xf32>, vector<2x8xf32> -> vector<2x8xf32>
    %c0_3 = arith.constant 0 : index
    %c0_4 = arith.constant 0 : index
    %3 = vector.load %arg3[%c0_3, %c0_4] : memref<2x1xf32, #tpu.memory_space<vmem>>, vector<2x1xf32>
    %4 = vector.broadcast %3 : vector<2x1xf32> to vector<2x8xf32>
    %5 = arith.addf %2, %4 : vector<2x8xf32>
    %6 = arith.negf %5 : vector<2x8xf32>
    %7 = math.exp %6 : vector<2x8xf32>
    %cst_5 = arith.constant 1.000000e+00 : f32
    %8 = vector.broadcast %cst_5 : f32 to vector<2x8xf32>
    %9 = arith.addf %8, %7 : vector<2x8xf32>
    %10 = arith.divf %8, %9 : vector<2x8xf32>
    %c0_6 = arith.constant 0 : index
    %c0_7 = arith.constant 0 : index
    %11 = vector.load %arg4[%c0_6, %c0_7] : memref<2x8xf32, #tpu.memory_space<vmem>>, vector<2x8xf32>
    tpu.vector_store %arg4[%c0_6, %c0_7], %10 {strides = array<i32>} : memref<2x8xf32, #tpu.memory_space<vmem>>, vector<2x8xf32>,
    return
  }
  func.func @transform_0(%arg0: i32) -> (i32, i32) {
    %c0_i32 = arith.constant 0 : i32
    %c0_i32_0 = arith.constant 0 : i32
    %c0_i32_1 = arith.constant 0 : i32
    return %c0_i32, %c0_i32_0 : i32, i32
  }
  func.func @transform_1(%arg0: i32) -> (i32, i32) {
    %c0_i32 = arith.constant 0 : i32
    %c0_i32_0 = arith.constant 0 : i32
    return %c0_i32, %arg0 : i32, i32
  }
  func.func @transform_2(%arg0: i32) -> (i32, i32) {
    %c0_i32 = arith.constant 0 : i32
    %c0_i32_0 = arith.constant 0 : i32
    %c0_i32_1 = arith.constant 0 : i32
    return %c0_i32, %c0_i32_0 : i32, i32
  }
  func.func @transform_3(%arg0: i32) -> (i32, i32) {
    %c0_i32 = arith.constant 0 : i32
    %c0_i32_0 = arith.constant 0 : i32
    return %c0_i32, %arg0 : i32, i32
  }
}

</mosaic_0001>

<llo_original>
// kernel: simple_robot_network.1
$region0: #{simple_robot_network.1}
  #allocation0 [shape = 'u32[]', space=smem, size = 0x4, offset = 0x4, fixed_abs, tag = 'smem constant byte address 0x4 - core index']
  #allocation1 [shape = 'u32[144,128]{1,0:T(1,128)}', space=vmem, size = 0x12000, scoped, tag = 'internal scratch']
  %s0 = inlined_call_operand.vmem [shape: f32[2,9], index: 0, kind: input, shape index: {}]
  %s1 = inlined_call_operand.vmem [shape: f32[9,8], index: 1, kind: input, shape index: {}]
  %s2 = inlined_call_operand.vmem [shape: f32[2,1], index: 2, kind: input, shape index: {}]
  %s3 = inlined_call_operand.hbm [shape: f32[2,8], index: 3, kind: output, shape index: {}]
  %s4 = sld [smem:[#allocation0]]
  $region22: #{simple_robot_network.1} parent=0
    _
  %s6 = ssub.s32 1, %s4
  %s7 = scalar_select 0, %s6, %s4
  $region1: #{simple_robot_network.1} parent=0
    #allocation2 [shape = 'u8[1024]{0}', space=vmem, size = 0x400, scoped, tag = 'output window, operand 0, single buffered']
    #allocation3 [shape = 's32[1]{0}', space=sflag, size = 0x4, scoped, tag = 'scoped memory for simple_robot_network.1']
    %8 = vsyncpa [#allocation3], 0
    // Predicated region
    $region2: #{simple_robot_network.1} parent=1 // pred_check
      _
    $region3: #{simple_robot_network.1} parent=1 // pred_check_branch
      %10 = sbr.rel (0) target = $region5
    $region4: #{simple_robot_network.1} parent=1 // pred_region
      _
    $region5: #{simple_robot_network.1} parent=1 // pred_fallthru
      _
    // Predicated region
    $region6: #{simple_robot_network.1} parent=1 // pred_check
      _
    $region7: #{simple_robot_network.1} parent=1 // pred_check_branch
      %12 = sbr.rel (0) target = $region9
    $region8: #{simple_robot_network.1} parent=1 // pred_region
      _
    $region9: #{simple_robot_network.1} parent=1 // pred_fallthru
      _
    // Predicated region
    $region10: #{simple_robot_network.1} parent=1 // pred_check
      _
    $region11: #{simple_robot_network.1} parent=1 // pred_check_branch
      %14 = sbr.rel (0) target = $region13
    $region12: #{simple_robot_network.1} parent=1 // pred_region
      _
    $region13: #{simple_robot_network.1} parent=1 // pred_fallthru
      _
    %v15 = vld [vmem:[%s0] sm:$0x3]
    %v16 = vld [vmem:[%s1] sm:$0xff]
    %v17 = vld [vmem:[%s1 + $0x8] sm:$0x1]
    %v18 = vld [vmem:[%s2] sm:$0x3]
    %20 = vset.pattern.permute.xlu0 0
    %21 = vperm.xlu0 %20, %v18
    %v22 = vpop.permute.xlu0 %21
    %vm24 = vcmask 72704
    %v26 = vsel %vm24, %v15, 0
    %vm28 = vcmask 1040384
    %v30 = vsel %vm28, %v17, 0
    %32 = vmatprep.subr.mxu0 0.0
    %33 = vmatpush1.msra.mxu0 0.0
    %34 = vmatprep.subr.mxu0 0.0
    %35 = vmatpush1.msra.mxu0 0.0
    %36 = vmatprep.subr.mxu0 0.0
    %37 = vmatpush1.msra.mxu0 0.0
    %38 = vmatprep.subr.mxu0 0.0
    %39 = vmatpush1.msra.mxu0 0.0
    %40 = vmatprep.subr.mxu0 0.0
    %41 = vmatpush1.msra.mxu0 0.0
    %42 = vmatprep.subr.mxu0 0.0
    %43 = vmatpush1.msra.mxu0 0.0
    %44 = vmatprep.subr.mxu0 0.0
    %45 = vmatpush1.msra.mxu0 0.0
    %46 = vmatprep.subr.mxu0 0.0
    %47 = vmatpush1.msra.mxu0 0.0
    %48 = vmatprep.subr.mxu0 0.0
    %49 = vmatpush1.msra.mxu0 0.0
    %50 = vmatprep.subr.mxu0 0.0
    %51 = vmatpush1.msra.mxu0 0.0
    %52 = vmatprep.subr.mxu0 0.0
    %53 = vmatpush1.msra.mxu0 0.0
    %54 = vmatprep.subr.mxu0 0.0
    %55 = vmatpush1.msra.mxu0 0.0
    %56 = vmatprep.subr.mxu0 0.0
    %57 = vmatpush1.msra.mxu0 0.0
    %58 = vmatprep.subr.mxu0 0.0
    %59 = vmatpush1.msra.mxu0 0.0
    %60 = vmatprep.subr.mxu0 0.0
    %61 = vmatpush1.msra.mxu0 %v30
    %62 = vmatprep.subr.mxu0 0.0
    %63 = vmatpush1.msra.mxu0 %v16
    %64 = vmatprep.subr.mxu0 0.0
    %65 = vmatpush2.msra.mxu0 0.0
    %66 = vmatprep.subr.mxu0 0.0
    %67 = vmatpush2.msra.mxu0 0.0
    %68 = vmatprep.subr.mxu0 0.0
    %69 = vmatpush2.msra.mxu0 0.0
    %70 = vmatprep.subr.mxu0 0.0
    %71 = vmatpush2.msra.mxu0 0.0
    %72 = vmatprep.subr.mxu0 0.0
    %73 = vmatpush2.msra.mxu0 0.0
    %74 = vmatprep.subr.mxu0 0.0
    %75 = vmatpush2.msra.mxu0 0.0
    %76 = vmatprep.subr.mxu0 0.0
    %77 = vmatpush2.msra.mxu0 0.0
    %78 = vmatprep.subr.mxu0 0.0
    %79 = vmatpush2.msra.mxu0 0.0
    %80 = vmatprep.subr.mxu0 0.0
    %81 = vmatpush2.msra.mxu0 0.0
    %82 = vmatprep.subr.mxu0 0.0
    %83 = vmatpush2.msra.mxu0 0.0
    %84 = vmatprep.subr.mxu0 0.0
    %85 = vmatpush2.msra.mxu0 0.0
    %86 = vmatprep.subr.mxu0 0.0
    %87 = vmatpush2.msra.mxu0 0.0
    %88 = vmatprep.subr.mxu0 0.0
    %89 = vmatpush2.msra.mxu0 0.0
    %90 = vmatprep.subr.mxu0 0.0
    %91 = vmatpush2.msra.mxu0 0.0
    %92 = vmatprep.subr.mxu0 0.0
    %93 = vmatpush2.msra.mxu0 0.0
    %94 = vmatprep.subr.mxu0 0.0
    %95 = vmatpush2.msra.mxu0 0.0
    %96 = vmatprep.mubr.f32.mxu0 0.0
    %97 = vmatmul.mubr.f32.gmra.mxu0 %v26
    %v98 = vpop.f32.mrf.mxu0
    %v99 = vadd.f32 %v22, %v98
    %v100 = vpop.f32.mrf.mxu0
    %101 = vdwg.mxu0
    %v102 = vxor.u32 %v99, 2147483648
    %v103 = vmul.f32 %v102, 1.442695
    %v104 = vpow.pop %v103
    %v105 = vadd.f32 %v104, 1.0
    %v106 = vrcp.pop %v105
    %v107 = vmul.f32 1.0, %v106
    %vm108 = vcmask 58368
    %109 = vst.msk [vmem:[#allocation2] sm:$0x3] %vm108, %v107
    // Predicated region
    $region14: #{simple_robot_network.1} parent=1 // pred_check
      _
    $region15: #{simple_robot_network.1} parent=1 // pred_check_branch
      %111 = sbr.rel (0) target = $region17
    $region16: #{simple_robot_network.1} parent=1 // pred_region
      %s113 = ssub.s32 32, 32
      %114 = vsyncadd [#allocation3], %s113
      %s116 = sshll.u32 [#allocation2], 4
      %s117 = int_to_ptr.vmem [resolvable:$true] %s116
      %119 = dma.vmem_to_hbm [thread:$0]  %s117, 32, %s3, [#allocation3]
    $region17: #{simple_robot_network.1} parent=1 // pred_fallthru
      _
    // Predicated region
    $region18: #{simple_robot_network.1} parent=1 // pred_check
      _
    $region19: #{simple_robot_network.1} parent=1 // pred_check_branch
      %121 = sbr.rel (0) target = $region21
    $region20: #{simple_robot_network.1} parent=1 // pred_region
      %122 = dma.done [#allocation3], 32
    $region21: #{simple_robot_network.1} parent=1 // pred_fallthru
      _
    %123 = vsyncpa [#allocation3], 1

</llo_original>
